<compile_context>
chip_gen: v7x
topology: tpu7x:2x2x1
jax: 0.10.0
libtpu: 0.0.40
codegen_flags: <defaults>
</compile_context>

<pallas_src>
import math

import jax
import jax.numpy as jnp
import numpy as np
from jax.experimental import pallas as pl
from jax.experimental.pallas import tpu as pltpu


def _round_up(x, m):
    return ((x + m - 1) // m) * m


def _choose_pack(c_in, c_out, max_pack=8):
    """Smallest pack so pack*c_in and pack*c_out are both multiples of 128 (lcm rule)."""
    def need(c):
        return 128 // math.gcd(128, c)
    ni, no = need(c_in), need(c_out)
    p = ni * no // math.gcd(ni, no)   # lcm(ni, no)
    if p <= max_pack:
        return p
    if no <= max_pack:                # fall back: at least make the store side lane-dense
        return no
    return 1


def _default_tm():
    # v5e is bounded by its 16 MiB scoped-VMEM default / single store slot -> smaller tile.
    try:
        kind = jax.devices()[0].device_kind.lower()
    except Exception:
        return 4096
    if "v5" in kind and ("lite" in kind or "5e" in kind):
        return 4096
    return 8192


def _vfe_kernel(x_ref, w_ref, shift_ref, o_ref):
    # x_ref:     (tm, K)  packed point-feature tile, native dtype (bf16 on the AMP path)
    # w_ref:     (K, N)   BN-scale-folded (block-diagonal) linear weight
    # shift_ref: (1, N)   folded BN shift (beta - mean*scale), f32
    # o_ref:     (tm, N)  output tile
    x = x_ref[...]
    w = w_ref[...]
    if x.dtype != w.dtype:            # fp16 input or bf16-compute knob for f32 input
        x = x.astype(w.dtype)
    y = jnp.dot(x, w, preferred_element_type=jnp.float32)
    y = y + shift_ref[...]
    o_ref[...] = jnp.maximum(y, 0.0).astype(o_ref.dtype)


def _launch(x2, w_k, shift2, out_dtype, tm):
    rows, k_dim = x2.shape
    n_dim = w_k.shape[1]

    # Per-row VMEM bytes (lane dim pads to 128 in VMEM; used only for sizing).
    k_pad = _round_up(k_dim, 128)
    n_pad = _round_up(n_dim, 128)
    bytes_per_row = k_pad * np.dtype(x2.dtype).itemsize + n_pad * np.dtype(out_dtype).itemsize

    # Double-buffered (x + out) tile budget: safe on v7x's 64 MiB physical VMEM, far under
    # v5e/v6e's 128 MiB; the scoped limit is raised explicitly below.
    tile_budget = 24 << 20
    tm_cap = max(8, (tile_budget // (2 * bytes_per_row)) // 8 * 8)

    if rows <= 16:
        tm_eff = rows                 # single full-extent tile (satisfies the sublane rule)
    else:
        # >= 2 grid steps so dimension_semantics=("parallel",) shards across v7x's two
        # TensorCores; also amortizes the ~0.35us fixed per-grid-step overhead.
        tm_eff = min(_round_up(max(tm, 8), 8), tm_cap, _round_up(pl.cdiv(rows, 2), 8))
    grid = (pl.cdiv(rows, tm_eff),)   # ragged last tile -> masked stores, no wrapper padding

    w_bytes = int(w_k.size) * np.dtype(w_k.dtype).itemsize
    need = 2 * tm_eff * bytes_per_row + 2 * w_bytes + (4 << 20)
    vmem_limit = int(min(48 << 20, max(need, 16 << 20)))

    return pl.pallas_call(
        _vfe_kernel,
        out_shape=jax.ShapeDtypeStruct((rows, n_dim), out_dtype),
        grid_spec=pltpu.PrefetchScalarGridSpec(
            num_scalar_prefetch=0,
            grid=grid,
            in_specs=[
                pl.BlockSpec((tm_eff, k_dim), lambda i: (i, 0)),   # x tile
                pl.BlockSpec((k_dim, n_dim), lambda i: (0, 0)),    # folded weight (constant)
                pl.BlockSpec((1, n_dim), lambda i: (0, 0)),        # BN shift (constant)
            ],
            out_specs=pl.BlockSpec((tm_eff, n_dim), lambda i: (i, 0)),
        ),
        compiler_params=pltpu.CompilerParams(
            dimension_semantics=("parallel",),     # shards row axis across v7x's 2 TCs
            vmem_limit_bytes=vmem_limit,
        ),
    )(x2, w_k, shift2)


def dynamic_vfe_layer(inputs, weight, gamma, beta, running_mean, running_var,
                      eps=1e-3, tm=None, out_dtype=jnp.float32,
                      bf16_matmul_for_f32=False):
    """Pallas implementation of DynamicVFELayer.forward (inference-mode BN).

    Args:
        inputs:       (M, C_in) point features (f32 / bf16 / fp16).
        weight:       (C_out, C_in) nn.Linear weight (bias=False).
        gamma, beta:  (C_out,) BN affine params.
        running_mean, running_var: (C_out,) BN running stats.
        tm:           row tile of the packed view per grid step (None -> per-device default).
        out_dtype:    float32 matches out_fp32=True; pass bfloat16 if the consumer allows it
                      (halves the dominant output HBM stream).
        bf16_matmul_for_f32: run the matmul in bf16 for f32 inputs (VMEM-only cast, no extra
                      HBM pass); slight precision trade vs true f32 MXU math.

    Returns:
        (M, C_out) features with ReLU applied.
    """
    M, c_in = inputs.shape
    c_out = weight.shape[0]
    if tm is None:
        tm = _default_tm()

    # Fold BN (running-stats form) into per-channel scale/shift; fold the scale into W.
    scale = gamma.astype(jnp.float32) / jnp.sqrt(running_var.astype(jnp.float32) + eps)
    shift = beta.astype(jnp.float32) - running_mean.astype(jnp.float32) * scale
    w_scaled = weight.astype(jnp.float32).T * scale[None, :]          # (C_in, C_out)

    # Compute dtype: bf16 MXU path for bf16/fp16 inputs (the auto_fp16 deployment path);
    # f32 inputs stay f32 unless explicitly allowed to drop to bf16.
    if inputs.dtype in (jnp.bfloat16, jnp.float16) or bf16_matmul_for_f32:
        compute_dtype = jnp.bfloat16
    else:
        compute_dtype = jnp.float32

    # Lane-dense packing: `pack` points per packed row so both pack*C_in and pack*C_out are
    # multiples of 128 (full-width loads AND stores, no lane padding of the x tile in VMEM).
    pack = _choose_pack(c_in, c_out)

    def run(x_mat, p):
        if p > 1:
            w_blk = jnp.kron(jnp.eye(p, dtype=jnp.float32), w_scaled)  # (p*C_in, p*C_out)
            shift_blk = jnp.tile(shift, p)
        else:
            w_blk, shift_blk = w_scaled, shift
        k_dim, n_dim = p * c_in, p * c_out
        rows = x_mat.shape[0] // p
        x2 = x_mat.reshape(rows, k_dim)                     # free row-major reshape
        out2 = _launch(x2,
                       w_blk.astype(compute_dtype),         # tiny (K, N) array
                       shift_blk.reshape(1, n_dim).astype(jnp.float32),
                       out_dtype, tm)
        return out2.reshape(rows * p, c_out)

    r = M % pack
    m_main = M - r
    if m_main == 0:
        # Fewer points than one pack group: run the (tiny) unpacked kernel.
        return run(inputs, 1)

    out_main = run(inputs[:m_main] if r else inputs, pack)
    if r == 0:
        return out_main

    # Tiny (< pack) ragged tail in plain jnp so the bulk keeps the lane-dense packed path.
    # Costs one extra pass over the output for the concatenate; callers that control M should
    # keep it a multiple of `pack`.
    xt = inputs[m_main:].astype(compute_dtype)
    yt = jnp.dot(xt, w_scaled.astype(compute_dtype),
                 preferred_element_type=jnp.float32) + shift[None, :]
    out_tail = jnp.maximum(yt, 0.0).astype(out_dtype)
    return jnp.concatenate([out_main, out_tail], axis=0)


def dynamic_vfe_layer_ref(inputs, weight, gamma, beta, running_mean, running_var, eps=1e-3):
    """Pure-JAX reference (full f32 precision) for correctness checking."""
    x = jnp.dot(inputs.astype(jnp.float32), weight.astype(jnp.float32).T,
                precision=jax.lax.Precision.HIGHEST)
    x = (x - running_mean) / jnp.sqrt(running_var + eps) * gamma + beta
    return jnp.maximum(x, 0.0)


if __name__ == "__main__":
    key = jax.random.PRNGKey(0)

    def make_params(pkey, c_in, c_out):
        k_w, k_g, k_b, k_m, k_v = jax.random.split(pkey, 5)
        weight = jax.random.normal(k_w, (c_out, c_in), dtype=jnp.float32) * 0.1
        gamma = 1.0 + 0.1 * jax.random.normal(k_g, (c_out,), dtype=jnp.float32)
        beta = 0.05 * jax.random.normal(k_b, (c_out,), dtype=jnp.float32)
        mean = 0.1 * jax.random.normal(k_m, (c_out,), dtype=jnp.float32)
        var = jnp.abs(1.0 + 0.1 * jax.random.normal(k_v, (c_out,), dtype=jnp.float32))
        return weight, gamma, beta, mean, var

    # (c_in, c_out, M, dtype, tm): covers the packed fast path (pack=4 -> K=128/N=256),
    # a ragged row-tile in bf16, the ragged-M tail path, and the pack=1 fallback with
    # non-128 lane widths.
    cases = [
        (32, 64, 512, jnp.float32, None),
        (32, 64, 660, jnp.bfloat16, 256),
        (32, 64, 301, jnp.float32, 128),
        (10, 24, 77, jnp.float32, None),
    ]
    for c_in, c_out, M, dt, tm in cases:
        pkey = jax.random.fold_in(key, c_in * 1000 + c_out)
        weight, gamma, beta, mean, var = make_params(pkey, c_in, c_out)
        x = jax.random.normal(jax.random.fold_in(key, M), (M, c_in),
                              dtype=jnp.float32).astype(dt)
        out = dynamic_vfe_layer(x, weight, gamma, beta, mean, var, tm=tm)
        out = jax.block_until_ready(out)
        ref = dynamic_vfe_layer_ref(x, weight, gamma, beta, mean, var)
        assert out.shape == (M, c_out) and out.dtype == jnp.float32, (out.shape, out.dtype)
        # Loose tolerance: the kernel matmul may run at bf16 / default MXU precision.
        assert jnp.allclose(out, ref, atol=5e-2, rtol=5e-2), \
            f"mismatch vs reference at M={M}, c_in={c_in}, c_out={c_out}"

    print("KERNEL_OK")
</pallas_src>

<mosaic_0001>
module attributes {stable_mosaic.version = 11 : i64} {
  func.func @_vfe_kernel(%arg0: i32, %arg1: memref<64x128xf32, #tpu.memory_space<vmem>>, %arg2: memref<128x256xf32, #tpu.memory_space<vmem>>, %arg3: memref<1x256xf32, #tpu.memory_space<vmem>>, %arg4: memref<64x256xf32, #tpu.memory_space<vmem>>) attributes {dimension_semantics = [#tpu.dimension_semantics<parallel>], iteration_bounds = array<i64: 2>, scalar_prefetch = 0 : i64, scratch_operands = 0 : i64, tpu.core_type = #tpu.core_type<tc>, window_params = [{transform_indices = @transform_0, window_bounds = array<i64: 64, 128>}, {pipeline_mode = #tpu.pipeline_mode<synchronous>, transform_indices = @transform_1, window_bounds = array<i64: 128, 256>}, {pipeline_mode = #tpu.pipeline_mode<synchronous>, transform_indices = @transform_2, window_bounds = array<i64: 1, 256>}, {transform_indices = @transform_3, window_bounds = array<i64: 64, 256>}]} {
    %c0 = arith.constant 0 : index
    %c0_0 = arith.constant 0 : index
    %0 = vector.load %arg1[%c0, %c0_0] : memref<64x128xf32, #tpu.memory_space<vmem>>, vector<64x128xf32>
    %c0_1 = arith.constant 0 : index
    %c0_2 = arith.constant 0 : index
    %1 = vector.load %arg2[%c0_1, %c0_2] : memref<128x256xf32, #tpu.memory_space<vmem>>, vector<128x256xf32>
    %cst = arith.constant dense<0.000000e+00> : vector<64x256xf32>
    %2 = tpu.matmul %0, %1, %cst {dimension_numbers = #tpu.dot_dimension_numbers<[1], [0], [0], [1], [0, 0, 1, 1], [], []>} : vector<64x128xf32>, vector<128x256xf32>, vector<64x256xf32> -> vector<64x256xf32>
    %c0_3 = arith.constant 0 : index
    %c0_4 = arith.constant 0 : index
    %3 = vector.load %arg3[%c0_3, %c0_4] : memref<1x256xf32, #tpu.memory_space<vmem>>, vector<1x256xf32>
    %4 = vector.broadcast %3 : vector<1x256xf32> to vector<64x256xf32>
    %5 = arith.addf %2, %4 : vector<64x256xf32>
    %cst_5 = arith.constant 0.000000e+00 : f32
    %6 = vector.broadcast %cst_5 : f32 to vector<64x256xf32>
    %7 = arith.maximumf %5, %6 : vector<64x256xf32>
    %c0_6 = arith.constant 0 : index
    %c0_7 = arith.constant 0 : index
    %8 = vector.load %arg4[%c0_6, %c0_7] : memref<64x256xf32, #tpu.memory_space<vmem>>, vector<64x256xf32>
    tpu.vector_store %arg4[%c0_6, %c0_7], %7 {strides = array<i32>} : memref<64x256xf32, #tpu.memory_space<vmem>>, vector<64x256xf32>,
    return
  }
  func.func @transform_0(%arg0: i32) -> (i32, i32) {
    %c0_i32 = arith.constant 0 : i32
    %c0_i32_0 = arith.constant 0 : i32
    return %arg0, %c0_i32 : i32, i32
  }
  func.func @transform_1(%arg0: i32) -> (i32, i32) {
    %c0_i32 = arith.constant 0 : i32
    %c0_i32_0 = arith.constant 0 : i32
    %c0_i32_1 = arith.constant 0 : i32
    return %c0_i32, %c0_i32_0 : i32, i32
  }
  func.func @transform_2(%arg0: i32) -> (i32, i32) {
    %c0_i32 = arith.constant 0 : i32
    %c0_i32_0 = arith.constant 0 : i32
    %c0_i32_1 = arith.constant 0 : i32
    return %c0_i32, %c0_i32_0 : i32, i32
  }
  func.func @transform_3(%arg0: i32) -> (i32, i32) {
    %c0_i32 = arith.constant 0 : i32
    %c0_i32_0 = arith.constant 0 : i32
    return %arg0, %c0_i32 : i32, i32
  }
}

</mosaic_0001>

<llo_original>
// kernel: tpu_custom_call.1
$region0: #{tpu_custom_call.1}
  #allocation0 [shape = 'u32[]', space=smem, size = 0x4, offset = 0x4, fixed_abs, tag = 'smem constant byte address 0x4 - core index']
  #allocation1 [shape = 'u32[144,128]{1,0:T(1,128)}', space=vmem, size = 0x12000, scoped, tag = 'internal scratch']
  %s0 = inlined_call_operand.hbm [shape: f32[128,128], index: 0, kind: input, shape index: {}]
  %s1 = inlined_call_operand.hbm [shape: f32[128,256], index: 1, kind: input, shape index: {}]
  %s2 = inlined_call_operand.vmem [shape: f32[1,256], index: 2, kind: input, shape index: {}]
  %s3 = inlined_call_operand.hbm [shape: f32[128,256], index: 3, kind: output, shape index: {}]
  %s4 = sld [smem:[#allocation0]]
  $region53: #{tpu_custom_call.1} parent=0
    _
  %s6 = ssub.s32 1, %s4
  %s7 = scalar_select 0, %s6, %s4
  $region1: #{tpu_custom_call.1} parent=0
    #allocation2 [shape = 'u8[65536]{0}', space=vmem, size = 0x10000, scoped, tag = 'input window, operand 0']
    #allocation3 [shape = 's32[2]{0}', space=sflag, size = 0x8, scoped, tag = 'scoped memory for tpu_custom_call.1']
    #allocation4 [shape = 's32[2]{0}', space=sflag, size = 0x8, scoped, tag = 'scoped memory for tpu_custom_call.1']
    #allocation5 [shape = 'u8[131072]{0}', space=vmem, size = 0x20000, scoped, tag = 'input window, operand 1, single buffered']
    #allocation6 [shape = 's32[1]{0}', space=sflag, size = 0x4, scoped, tag = 'scoped memory for tpu_custom_call.1']
    #allocation7 [shape = 'u8[131072]{0}', space=vmem, size = 0x20000, scoped, tag = 'output window, operand 0']
    %8 = vsyncpa [#allocation3], 0
    %s9 = scalar_lea.sflag [#allocation3], 1
    %10 = vsyncpa %s9, 0
    %11 = vsyncpa [#allocation6], 0
    %12 = vsyncpa [#allocation4], 0
    %s13 = scalar_lea.sflag [#allocation4], 1
    %14 = vsyncpa %s13, 0
    loop: start=0, step=1, limit=4
    $region2: #{tpu_custom_call.1} parent=1 // loop_pre_header
      _
    $region3: #{tpu_custom_call.1} parent=1 // loop_header
      %s16 = sphi 0, %s20
      %p17 = scmp.ge.s32.totalorder %s16, 4
      %s26 = sphi 0, %s28
      %s29 = sphi 0, %s26
      %s30 = sphi 0, %s29
      %s46 = sphi 0, %s30
      %s50 = sphi 0, %s50
      %s52 = sphi 0, %s50
      %s53 = sphi 0, %s52
      %s67 = sphi 0, %s53
      %s71 = sphi 0, %s71
      %s73 = sphi 0, %s71
      %s74 = sphi 0, %s73
      %s88 = sphi 0, %s74
      %s94 = sphi 0, %s96
      %s97 = sphi 0, %s94
      %s98 = sphi 0, %s97
      %s114 = sphi 0, %s98
    $region4: #{tpu_custom_call.1} parent=1 // loop_header_branch
      %19 = sbr.rel (%p17) target = $region8
    $region5: #{tpu_custom_call.1} parent=1 // loop_body
      %s21 = ssub.s32 %s16, 1
      %s22 = ssub.s32 %s16, 2
      %s23 = sadd.s32 %s16, 1
      %s24 = ssub.s32 %s16, %s23
      %p25 = scmp.eq.s32.totalorder %s24, 0
      %s27 = sadd.s32 %s26, 1
      %s28 = scalar_select %p25, %s26, %s27
      %p31 = pneg %p25
      %p32 = scmp.eq.s32.totalorder %s16, 1
      %p33 = por %p31, %p32
      %p34 = scmp.ne.s32.totalorder %s26, %s29
      %p35 = scmp.eq.s32.totalorder %s16, 0
      %p36 = por %p34, %p35
      %p37 = scmp.ne.s32.totalorder %s26, %s29
      %p38 = scmp.eq.s32.totalorder %s21, 1
      %p39 = por %p37, %p38
      %p40 = scmp.ne.s32.totalorder %s29, %s30
      %p41 = scmp.eq.s32.totalorder %s21, 0
      %p42 = por %p40, %p41
      %p43 = scmp.ne.s32.totalorder %s29, %s30
      %p44 = scmp.eq.s32.totalorder %s22, 1
      %p45 = por %p43, %p44
      %p47 = scmp.ne.s32.totalorder %s30, %s46
      %p48 = scmp.eq.s32.totalorder %s22, 0
      %p49 = por %p47, %p48
      %s51 = sadd.s32 %s50, 1
      %p54 = scmp.eq.s32.totalorder %s16, 1
      %p55 = scmp.ne.s32.totalorder %s50, %s52
      %p56 = scmp.eq.s32.totalorder %s16, 0
      %p57 = por %p55, %p56
      %p58 = scmp.ne.s32.totalorder %s50, %s52
      %p59 = scmp.eq.s32.totalorder %s21, 1
      %p60 = por %p58, %p59
      %p61 = scmp.ne.s32.totalorder %s52, %s53
      %p62 = scmp.eq.s32.totalorder %s21, 0
      %p63 = por %p61, %p62
      %p64 = scmp.ne.s32.totalorder %s52, %s53
      %p65 = scmp.eq.s32.totalorder %s22, 1
      %p66 = por %p64, %p65
      %p68 = scmp.ne.s32.totalorder %s53, %s67
      %p69 = scmp.eq.s32.totalorder %s22, 0
      %p70 = por %p68, %p69
      %s72 = sadd.s32 %s71, 1
      %p75 = scmp.eq.s32.totalorder %s16, 1
      %p76 = scmp.ne.s32.totalorder %s71, %s73
      %p77 = scmp.eq.s32.totalorder %s16, 0
      %p78 = por %p76, %p77
      %p79 = scmp.ne.s32.totalorder %s71, %s73
      %p80 = scmp.eq.s32.totalorder %s21, 1
      %p81 = por %p79, %p80
      %p82 = scmp.ne.s32.totalorder %s73, %s74
      %p83 = scmp.eq.s32.totalorder %s21, 0
      %p84 = por %p82, %p83
      %p85 = scmp.ne.s32.totalorder %s73, %s74
      %p86 = scmp.eq.s32.totalorder %s22, 1
      %p87 = por %p85, %p86
      %p89 = scmp.ne.s32.totalorder %s74, %s88
      %p90 = scmp.eq.s32.totalorder %s22, 0
      %p91 = por %p89, %p90
      %s92 = ssub.s32 %s16, %s23
      %p93 = scmp.eq.s32.totalorder %s92, 0
      %s95 = sadd.s32 %s94, 1
      %s96 = scalar_select %p93, %s94, %s95
      %p99 = pneg %p93
      %p100 = scmp.eq.s32.totalorder %s16, 1
      %p101 = por %p99, %p100
      %p102 = scmp.ne.s32.totalorder %s94, %s97
      %p103 = scmp.eq.s32.totalorder %s16, 0
      %p104 = por %p102, %p103
      %p105 = scmp.ne.s32.totalorder %s94, %s97
      %p106 = scmp.eq.s32.totalorder %s21, 1
      %p107 = por %p105, %p106
      %p108 = scmp.ne.s32.totalorder %s97, %s98
      %p109 = scmp.eq.s32.totalorder %s21, 0
      %p110 = por %p108, %p109
      %p111 = scmp.ne.s32.totalorder %s97, %s98
      %p112 = scmp.eq.s32.totalorder %s22, 1
      %p113 = por %p111, %p112
      %p115 = scmp.ne.s32.totalorder %s98, %s114
      %p116 = scmp.eq.s32.totalorder %s22, 0
      %p117 = por %p115, %p116
      %p118 = scmp.le.s32.totalorder 1, %s16
      %p119 = scmp.lt.s32.totalorder %s16, 3
      %p120 = pnand %p118, %p119
      %p121 = pneg %p120
      // Predicated region
      $region9: #{tpu_custom_call.1} parent=5 // pred_check
        _
      $region10: #{tpu_custom_call.1} parent=5 // pred_check_branch
        %123 = sbr.rel (%p120) target = $region12
      $region11: #{tpu_custom_call.1} parent=5 // pred_region
        %s124 = ssub.s32 %s16, 1
        // Predicated region
        $region13: #{tpu_custom_call.1} parent=11 // pred_check
          %p125 = pneg %p63
        $region14: #{tpu_custom_call.1} parent=11 // pred_check_branch
          %127 = sbr.rel (%p125) target = $region16
        $region15: #{tpu_custom_call.1} parent=11 // pred_region
          %s129 = ssub.s32 4096, 4096
          %130 = vsyncadd [#allocation6], %s129
          %s131 = sshll.u32 [#allocation5], 4
          %s132 = int_to_ptr.vmem [resolvable:$true] %s131
          %137 = dma.hbm_to_vmem [thread:$0]  %s1, 4096, %s132, [#allocation6], 256, 256, 16
        $region16: #{tpu_custom_call.1} parent=11 // pred_fallthru
          _
        // Predicated region
        $region17: #{tpu_custom_call.1} parent=11 // pred_check
          %p138 = pneg %p84
        $region18: #{tpu_custom_call.1} parent=11 // pred_check_branch
          %140 = sbr.rel (%p138) target = $region20
        $region19: #{tpu_custom_call.1} parent=11 // pred_region
          _
        $region20: #{tpu_custom_call.1} parent=11 // pred_fallthru
          _
      $region12: #{tpu_custom_call.1} parent=5 // pred_fallthru
        _
      %p141 = scmp.lt.s32.totalorder %s16, 2
      // Predicated region
      $region21: #{tpu_custom_call.1} parent=5 // pred_check
        %p142 = pneg %p141
      $region22: #{tpu_custom_call.1} parent=5 // pred_check_branch
        %144 = sbr.rel (%p142) target = $region24
      $region23: #{tpu_custom_call.1} parent=5 // pred_region
        // Predicated region
        $region25: #{tpu_custom_call.1} parent=23 // pred_check
          %p145 = pneg %p36
        $region26: #{tpu_custom_call.1} parent=23 // pred_check_branch
          %147 = sbr.rel (%p145) target = $region28
        $region27: #{tpu_custom_call.1} parent=23 // pred_region
          %s148 = sand.u32 %s26, 1
          %s149 = scalar_lea.sflag [#allocation3], %s148
          %s150 = sand.u32 %s26, 1
          %s151 = smul.addr %s150, 64
          %s152 = scalar_lea.vmem [#allocation2], %s151
          %s153 = smul.u32 8, %s16
          %s155 = ssub.s32 1024, 1024
          %156 = vsyncadd %s149, %s155
          %s157 = smul.addr %s153, 128
          %s158 = scalar_lea.hbm %s0, %s157
          %s159 = sshll.u32 %s152, 4
          %s160 = int_to_ptr.vmem [resolvable:$true] %s159
          %165 = dma.hbm_to_vmem [thread:$0]  %s158, 1024, %s160, %s149, 128, 128, 8
        $region28: #{tpu_custom_call.1} parent=23 // pred_fallthru
          _
      $region24: #{tpu_custom_call.1} parent=5 // pred_fallthru
        _
      %p166 = scmp.le.s32.totalorder 1, %s16
      %p167 = scmp.lt.s32.totalorder %s16, 3
      %p168 = pnand %p166, %p167
      %p169 = pneg %p168
      // Predicated region
      $region29: #{tpu_custom_call.1} parent=5 // pred_check
        _
      $region30: #{tpu_custom_call.1} parent=5 // pred_check_branch
        %171 = sbr.rel (%p168) target = $region32
      $region31: #{tpu_custom_call.1} parent=5 // pred_region
        %s172 = ssub.s32 %s16, 1
        %s173 = sand.u32 %s29, 1
        %s174 = scalar_lea.sflag [#allocation3], %s173
        %s175 = sand.u32 %s29, 1
        %s176 = smul.addr %s175, 64
        %s177 = scalar_lea.vmem [#allocation2], %s176
        // Predicated region
        $region33: #{tpu_custom_call.1} parent=31 // pred_check
          %p178 = pneg %p42
        $region34: #{tpu_custom_call.1} parent=31 // pred_check_branch
          %180 = sbr.rel (%p178) target = $region36
        $region35: #{tpu_custom_call.1} parent=31 // pred_region
          %181 = dma.done %s174, 1024
        $region36: #{tpu_custom_call.1} parent=31 // pred_fallthru
          _
        // Predicated region
        $region37: #{tpu_custom_call.1} parent=31 // pred_check
          %p182 = pneg %p63
        $region38: #{tpu_custom_call.1} parent=31 // pred_check_branch
          %184 = sbr.rel (%p182) target = $region40
        $region39: #{tpu_custom_call.1} parent=31 // pred_region
          %185 = dma.done [#allocation6], 4096
        $region40: #{tpu_custom_call.1} parent=31 // pred_fallthru
          _
        %s186 = sand.u32 %s29, 1
        %s187 = scalar_lea.sflag [#allocation3], %s186
        %s188 = sand.u32 %s29, 1
        %s189 = smul.addr %s188, 64
        %s190 = scalar_lea.vmem [#allocation2], %s189
        %p191 = pneg %p42
        %p192 = pneg %p39
        %p193 = pneg %p63
        %p194 = pneg %p60
        %p195 = pneg %p84
        %p196 = pneg %p81
        %p197 = pneg %p110
        %p198 = pneg %p107
        %s199 = sand.u32 %s97, 1
        %s200 = scalar_lea.sflag [#allocation4], %s199
        %s201 = sand.u32 %s97, 1
        %s202 = smul.addr %s201, 128
        %s203 = scalar_lea.vmem [#allocation7], %s202
        %s204 = smul.u32 8, %s21
        %s205 = smul.u32 8, %s21
        %v206 = vld [vmem:[%s177] sm:$0xff]
        %v207 = vld [vmem:[%s177 + $0x8] sm:$0xff]
        %v208 = vld [vmem:[%s177 + $0x10] sm:$0xff]
        %v209 = vld [vmem:[%s177 + $0x18] sm:$0xff]
        %v210 = vld [vmem:[%s177 + $0x20] sm:$0xff]
        %v211 = vld [vmem:[%s177 + $0x28] sm:$0xff]
        %v212 = vld [vmem:[%s177 + $0x30] sm:$0xff]
        %v213 = vld [vmem:[%s177 + $0x38] sm:$0xff]
        %v214 = vld [vmem:[#allocation5] sm:$0xff]
        %v215 = vld [vmem:[#allocation5 + $0x8] sm:$0xff]
        %v216 = vld [vmem:[#allocation5 + $0x10] sm:$0xff]
        %v217 = vld [vmem:[#allocation5 + $0x18] sm:$0xff]
        %v218 = vld [vmem:[#allocation5 + $0x20] sm:$0xff]
        %v219 = vld [vmem:[#allocation5 + $0x28] sm:$0xff]
        %v220 = vld [vmem:[#allocation5 + $0x30] sm:$0xff]
        %v221 = vld [vmem:[#allocation5 + $0x38] sm:$0xff]
        %v222 = vld [vmem:[#allocation5 + $0x40] sm:$0xff]
        %v223 = vld [vmem:[#allocation5 + $0x48] sm:$0xff]
        %v224 = vld [vmem:[#allocation5 + $0x50] sm:$0xff]
        %v225 = vld [vmem:[#allocation5 + $0x58] sm:$0xff]
        %v226 = vld [vmem:[#allocation5 + $0x60] sm:$0xff]
        %v227 = vld [vmem:[#allocation5 + $0x68] sm:$0xff]
        %v228 = vld [vmem:[#allocation5 + $0x70] sm:$0xff]
        %v229 = vld [vmem:[#allocation5 + $0x78] sm:$0xff]
        %v230 = vld [vmem:[#allocation5 + $0x80] sm:$0xff]
        %v231 = vld [vmem:[#allocation5 + $0x88] sm:$0xff]
        %v232 = vld [vmem:[#allocation5 + $0x90] sm:$0xff]
        %v233 = vld [vmem:[#allocation5 + $0x98] sm:$0xff]
        %v234 = vld [vmem:[#allocation5 + $0xa0] sm:$0xff]
        %v235 = vld [vmem:[#allocation5 + $0xa8] sm:$0xff]
        %v236 = vld [vmem:[#allocation5 + $0xb0] sm:$0xff]
        %v237 = vld [vmem:[#allocation5 + $0xb8] sm:$0xff]
        %v238 = vld [vmem:[#allocation5 + $0xc0] sm:$0xff]
        %v239 = vld [vmem:[#allocation5 + $0xc8] sm:$0xff]
        %v240 = vld [vmem:[#allocation5 + $0xd0] sm:$0xff]
        %v241 = vld [vmem:[#allocation5 + $0xd8] sm:$0xff]
        %v242 = vld [vmem:[#allocation5 + $0xe0] sm:$0xff]
        %v243 = vld [vmem:[#allocation5 + $0xe8] sm:$0xff]
        %v244 = vld [vmem:[#allocation5 + $0xf0] sm:$0xff]
        %v245 = vld [vmem:[#allocation5 + $0xf8] sm:$0xff]
        %v246 = vld [vmem:[%s2] sm:$0x3]
        %v248 = vlaneseq
        %v249 = vshrl.u32 %v248, 7
        %v250 = vsub.s32 0, %v249
        %v251 = vrot.slane %v246, %v250
        %v252 = vlaneseq
        %v253 = vshrl.u32 %v252, 7
        %v254 = vsub.s32 1, %v253
        %v255 = vrot.slane %v246, %v254
        %258 = vmatprep.subr.mxu0 %v215
        %259 = vmatpush1.msra.mxu0 %v214
        %260 = vmatprep.subr.mxu0 %v217
        %261 = vmatpush1.msra.mxu0 %v216
        %262 = vmatprep.subr.mxu0 %v219
        %263 = vmatpush1.msra.mxu0 %v218
        %264 = vmatprep.subr.mxu0 %v221
        %265 = vmatpush1.msra.mxu0 %v220
        %266 = vmatprep.subr.mxu0 %v223
        %267 = vmatpush1.msra.mxu0 %v222
        %268 = vmatprep.subr.mxu0 %v225
        %269 = vmatpush1.msra.mxu0 %v224
        %270 = vmatprep.subr.mxu0 %v227
        %271 = vmatpush1.msra.mxu0 %v226
        %272 = vmatprep.subr.mxu0 %v229
        %273 = vmatpush1.msra.mxu0 %v228
        %274 = vmatprep.subr.mxu0 %v231
        %275 = vmatpush1.msra.mxu0 %v230
        %276 = vmatprep.subr.mxu0 %v233
        %277 = vmatpush1.msra.mxu0 %v232
        %278 = vmatprep.subr.mxu0 %v235
        %279 = vmatpush1.msra.mxu0 %v234
        %280 = vmatprep.subr.mxu0 %v237
        %281 = vmatpush1.msra.mxu0 %v236
        %282 = vmatprep.subr.mxu0 %v239
        %283 = vmatpush1.msra.mxu0 %v238
        %284 = vmatprep.subr.mxu0 %v241
        %285 = vmatpush1.msra.mxu0 %v240
        %286 = vmatprep.subr.mxu0 %v243
        %287 = vmatpush1.msra.mxu0 %v242
        %288 = vmatprep.subr.mxu0 %v245
        %289 = vmatpush1.msra.mxu0 %v244
        %290 = vmatprep.subr.mxu0 0.0
        %291 = vmatpush1.msra.mxu0 0.0
        %292 = vmatprep.subr.mxu0 0.0
        %293 = vmatpush1.msra.mxu0 0.0
        %294 = vmatprep.subr.mxu0 0.0
        %295 = vmatpush1.msra.mxu0 0.0
        %296 = vmatprep.subr.mxu0 0.0
        %297 = vmatpush1.msra.mxu0 0.0
        %298 = vmatprep.subr.mxu0 0.0
        %299 = vmatpush1.msra.mxu0 0.0
        %300 = vmatprep.subr.mxu0 0.0
        %301 = vmatpush1.msra.mxu0 0.0
        %302 = vmatprep.subr.mxu0 0.0
        %303 = vmatpush1.msra.mxu0 0.0
        %304 = vmatprep.subr.mxu0 0.0
        %305 = vmatpush1.msra.mxu0 0.0
        %306 = vmatprep.subr.mxu0 0.0
        %307 = vmatpush1.msra.mxu0 0.0
        %308 = vmatprep.subr.mxu0 0.0
        %309 = vmatpush1.msra.mxu0 0.0
        %310 = vmatprep.subr.mxu0 0.0
        %311 = vmatpush1.msra.mxu0 0.0
        %312 = vmatprep.subr.mxu0 0.0
        %313 = vmatpush1.msra.mxu0 0.0
        %314 = vmatprep.subr.mxu0 0.0
        %315 = vmatpush1.msra.mxu0 0.0
        %316 = vmatprep.subr.mxu0 0.0
        %317 = vmatpush1.msra.mxu0 0.0
        %318 = vmatprep.subr.mxu0 0.0
        %319 = vmatpush1.msra.mxu0 0.0
        %320 = vmatprep.subr.mxu0 0.0
        %321 = vmatpush1.msra.mxu0 0.0
        %322 = vmatprep.mubr.f32.mxu0 0.0
        %323 = vmatmul.mubr.f32.gmra.mrb[0].mxu0 %v206
        %v324 = vpop.f32.mrb[0].mxu0
        %v325 = vadd.f32 %v251, %v324
        %v326 = vpop.f32.mrb[0].mxu0
        %v327 = vadd.f32 %v255, %v326
        %328 = vmatprep.mubr.f32.mxu0 0.0
        %329 = vmatmul.mubr.f32.gmra.mrb[0].mxu0 %v207
        %v330 = vpop.f32.mrb[0].mxu0
        %v331 = vadd.f32 %v251, %v330
        %v332 = vpop.f32.mrb[0].mxu0
        %v333 = vadd.f32 %v255, %v332
        %334 = vmatprep.mubr.f32.mxu0 0.0
        %335 = vmatmul.mubr.f32.gmra.mrb[0].mxu0 %v208
        %v336 = vpop.f32.mrb[0].mxu0
        %v337 = vadd.f32 %v251, %v336
        %v338 = vpop.f32.mrb[0].mxu0
        %v339 = vadd.f32 %v255, %v338
        %340 = vmatprep.mubr.f32.mxu0 0.0
        %341 = vmatmul.mubr.f32.gmra.mrb[0].mxu0 %v209
        %v342 = vpop.f32.mrb[0].mxu0
        %v343 = vadd.f32 %v251, %v342
        %v344 = vpop.f32.mrb[0].mxu0
        %v345 = vadd.f32 %v255, %v344
        %346 = vmatprep.mubr.f32.mxu0 0.0
        %347 = vmatmul.mubr.f32.gmra.mrb[0].mxu0 %v210
        %v348 = vpop.f32.mrb[0].mxu0
        %v349 = vadd.f32 %v251, %v348
        %v350 = vpop.f32.mrb[0].mxu0
        %v351 = vadd.f32 %v255, %v350
        %352 = vmatprep.mubr.f32.mxu0 0.0
        %353 = vmatmul.mubr.f32.gmra.mrb[0].mxu0 %v211
        %v354 = vpop.f32.mrb[0].mxu0
        %v355 = vadd.f32 %v251, %v354
        %v356 = vpop.f32.mrb[0].mxu0
        %v357 = vadd.f32 %v255, %v356
        %358 = vmatprep.mubr.f32.mxu0 0.0
        %359 = vmatmul.mubr.f32.gmra.mrb[0].mxu0 %v212
        %v360 = vpop.f32.mrb[0].mxu0
        %v361 = vadd.f32 %v251, %v360
        %v362 = vpop.f32.mrb[0].mxu0
        %v363 = vadd.f32 %v255, %v362
        %364 = vmatprep.mubr.f32.mxu0 0.0
        %365 = vmatmul.mubr.f32.gmra.mrb[0].mxu0 %v213
        %v366 = vpop.f32.mrb[0].mxu0
        %v367 = vadd.f32 %v251, %v366
        %v368 = vpop.f32.mrb[0].mxu0
        %v369 = vadd.f32 %v255, %v368
        %370 = vdwg.mxu0
        %v371 = vmax.f32 %v325, 0.0
        %v372 = vmax.f32 %v327, 0.0
        %v373 = vmax.f32 %v331, 0.0
        %v374 = vmax.f32 %v333, 0.0
        %v375 = vmax.f32 %v337, 0.0
        %v376 = vmax.f32 %v339, 0.0
        %v377 = vmax.f32 %v343, 0.0
        %v378 = vmax.f32 %v345, 0.0
        %v379 = vmax.f32 %v349, 0.0
        %v380 = vmax.f32 %v351, 0.0
        %v381 = vmax.f32 %v355, 0.0
        %v382 = vmax.f32 %v357, 0.0
        %v383 = vmax.f32 %v361, 0.0
        %v384 = vmax.f32 %v363, 0.0
        %v385 = vmax.f32 %v367, 0.0
        %v386 = vmax.f32 %v369, 0.0
        %387 = vst [vmem:[%s203] sm:$0xff] %v371
        %388 = vst [vmem:[%s203 + $0x8] sm:$0xff] %v372
        %389 = vst [vmem:[%s203 + $0x10] sm:$0xff] %v373
        %390 = vst [vmem:[%s203 + $0x18] sm:$0xff] %v374
        %391 = vst [vmem:[%s203 + $0x20] sm:$0xff] %v375
        %392 = vst [vmem:[%s203 + $0x28] sm:$0xff] %v376
        %393 = vst [vmem:[%s203 + $0x30] sm:$0xff] %v377
        %394 = vst [vmem:[%s203 + $0x38] sm:$0xff] %v378
        %395 = vst [vmem:[%s203 + $0x40] sm:$0xff] %v379
        %396 = vst [vmem:[%s203 + $0x48] sm:$0xff] %v380
        %397 = vst [vmem:[%s203 + $0x50] sm:$0xff] %v381
        %398 = vst [vmem:[%s203 + $0x58] sm:$0xff] %v382
        %399 = vst [vmem:[%s203 + $0x60] sm:$0xff] %v383
        %400 = vst [vmem:[%s203 + $0x68] sm:$0xff] %v384
        %401 = vst [vmem:[%s203 + $0x70] sm:$0xff] %v385
        %402 = vst [vmem:[%s203 + $0x78] sm:$0xff] %v386
        %s403 = sand.u32 %s97, 1
        %s404 = scalar_lea.sflag [#allocation4], %s403
        %s405 = sand.u32 %s97, 1
        %s406 = smul.addr %s405, 128
        %s407 = scalar_lea.vmem [#allocation7], %s406
        // Predicated region
        $region41: #{tpu_custom_call.1} parent=31 // pred_check
          %p408 = pneg %p107
        $region42: #{tpu_custom_call.1} parent=31 // pred_check_branch
          %410 = sbr.rel (%p408) target = $region44
        $region43: #{tpu_custom_call.1} parent=31 // pred_region
          %s411 = smul.u32 8, %s21
          %s413 = ssub.s32 2048, 2048
          %414 = vsyncadd %s404, %s413
          %s415 = smul.addr %s411, 2
          %s416 = smul.addr %s415, 128
          %s417 = scalar_lea.hbm %s3, %s416
          %s418 = sshll.u32 %s407, 4
          %s419 = int_to_ptr.vmem [resolvable:$true] %s418
          %424 = dma.vmem_to_hbm [thread:$0]  %s419, 2048, %s417, %s404, 256, 256, 16
        $region44: #{tpu_custom_call.1} parent=31 // pred_fallthru
          _
      $region32: #{tpu_custom_call.1} parent=5 // pred_fallthru
        _
      %p425 = scmp.le.s32.totalorder 2, %s16
      // Predicated region
      $region45: #{tpu_custom_call.1} parent=5 // pred_check
        %p426 = pneg %p425
      $region46: #{tpu_custom_call.1} parent=5 // pred_check_branch
        %428 = sbr.rel (%p426) target = $region48
      $region47: #{tpu_custom_call.1} parent=5 // pred_region
        %s429 = ssub.s32 %s16, 2
        // Predicated region
        $region49: #{tpu_custom_call.1} parent=47 // pred_check
          %p430 = pneg %p113
        $region50: #{tpu_custom_call.1} parent=47 // pred_check_branch
          %432 = sbr.rel (%p430) target = $region52
        $region51: #{tpu_custom_call.1} parent=47 // pred_region
          %s433 = sand.u32 %s98, 1
          %s434 = scalar_lea.sflag [#allocation4], %s433
          %s435 = sand.u32 %s98, 1
          %s436 = smul.addr %s435, 128
          %s437 = scalar_lea.vmem [#allocation7], %s436
          %438 = dma.done %s434, 2048
        $region52: #{tpu_custom_call.1} parent=47 // pred_fallthru
          _
      $region48: #{tpu_custom_call.1} parent=5 // pred_fallthru
        _
    $region6: #{tpu_custom_call.1} parent=1 // loop_footer
      %s20 = sadd.s32 1, %s16
    $region7: #{tpu_custom_call.1} parent=1 // loop_footer_branch
      %15 = sbr.rel target = $region3
    $region8: #{tpu_custom_call.1} parent=1 // loop_exit
      _
    %439 = vsyncpa [#allocation3], 1
    %s440 = scalar_lea.sflag [#allocation3], 1
    %441 = vsyncpa %s440, 1
    %442 = vsyncpa [#allocation6], 1
    %443 = vsyncpa [#allocation4], 1
    %s444 = scalar_lea.sflag [#allocation4], 1
    %445 = vsyncpa %s444, 1

</llo_original>
